<compile_context>
chip_gen: v7x
topology: tpu7x:2x2x1
jax: 0.10.0
libtpu: 0.0.40
codegen_flags: <defaults>
</compile_context>

<pallas_src>
import jax
import jax.numpy as jnp
import numpy as np
from jax.experimental import pallas as pl
from jax.experimental.pallas import tpu as pltpu

KERNEL_SIZE = 5     # Branch default
STRIDE = 1          # Branch default (kernel assumes stride == 1)


def _fold_conv_bn(w, b, gamma, beta, mean, var, eps=1e-5):
    """Fold Conv1d bias + eval-mode BatchNorm1d into (tap-major weight, shift).

    w: (c_out, c_in, K), b/gamma/beta/mean/var: (c_out,)
    returns  w_tap: (K, c_out, c_in)  = (gamma/sqrt(var+eps)) * w, tap-major
             shift: (c_out, 1)        = scale*(b - mean) + beta
    """
    scale = gamma / jnp.sqrt(var + eps)
    w_tap = jnp.transpose(w * scale[:, None, None], (2, 0, 1))
    shift = (scale * (b - mean) + beta)[:, None]
    return w_tap.astype(jnp.float32), shift.astype(jnp.float32)


def branch_kernel(x_ref, w1_ref, s1_ref, w2_ref, s2_ref, o_ref):
    # x_ref : (1, c_in, L)         one batch element
    # w1_ref: (K, c_out, c_in)     BN-folded conv1 weight, tap-major
    # s1_ref: (c_out, 1)           BN-folded conv1 shift (bias + BN)
    # w2_ref: (K, 2*c_out, c_out)  BN-folded conv2 weight, tap-major
    # s2_ref: (2*c_out, 1)
    # o_ref : (1, 2*c_out, L2)
    x = x_ref[0]                                      # (c_in, L)
    k_taps = w1_ref.shape[0]
    l_in = x.shape[1]
    l1 = l_in - k_taps + 1
    l2 = l1 - k_taps + 1

    # conv1 + bias/BN + ReLU  (Dropout == identity at inference)
    h1 = jnp.zeros((w1_ref.shape[1], l1), dtype=jnp.float32)
    for k in range(k_taps):                           # K = 5, statically unrolled
        h1 = h1 + jnp.dot(w1_ref[k], x[:, k:k + l1],
                          preferred_element_type=jnp.float32)
    h1 = jnp.maximum(h1 + s1_ref[...], 0.0)
    # TODO(synk): training-mode Dropout (pltpu.prng_*) and batch-statistics
    # BatchNorm are not implemented; this kernel is the eval-mode forward pass.

    # conv2 + bias/BN + ReLU
    h2 = jnp.zeros((w2_ref.shape[1], l2), dtype=jnp.float32)
    for k in range(k_taps):
        h2 = h2 + jnp.dot(w2_ref[k], h1[:, k:k + l2],
                          preferred_element_type=jnp.float32)
    o_ref[0] = jnp.maximum(h2 + s2_ref[...], 0.0)


def branch_forward(x, conv1_w, conv1_b, bn1, conv2_w, conv2_b, bn2, eps=1e-5):
    """x: (B, c_in, L) float32 -> (B, 2*c_out, L2) (Branch.forward, eval mode)."""
    B, c_in, L = x.shape
    c_out, _, K = conv1_w.shape
    assert conv2_w.shape == (2 * c_out, c_out, K)
    assert STRIDE == 1, "kernel implements the default stride=1 Branch"
    l1 = L - K + 1
    l2 = l1 - K + 1

    w1_tap, s1 = _fold_conv_bn(conv1_w, conv1_b, *bn1, eps=eps)
    w2_tap, s2 = _fold_conv_bn(conv2_w, conv2_b, *bn2, eps=eps)

    flops = B * (2 * c_out * c_in * K * l1 + 2 * (2 * c_out) * c_out * K * l2)
    bytes_accessed = 4 * (x.size + w1_tap.size + s1.size + w2_tap.size
                          + s2.size + B * 2 * c_out * l2)

    out = pl.pallas_call(
        branch_kernel,
        out_shape=jax.ShapeDtypeStruct((B, 2 * c_out, l2), jnp.float32),
        grid=(B,),
        in_specs=[
            pl.BlockSpec((1, c_in, L), lambda b: (b, 0, 0)),
            pl.BlockSpec((K, c_out, c_in), lambda b: (0, 0, 0)),
            pl.BlockSpec((c_out, 1), lambda b: (0, 0)),
            pl.BlockSpec((K, 2 * c_out, c_out), lambda b: (0, 0, 0)),
            pl.BlockSpec((2 * c_out, 1), lambda b: (0, 0)),
        ],
        out_specs=pl.BlockSpec((1, 2 * c_out, l2), lambda b: (b, 0, 0)),
        compiler_params=pltpu.CompilerParams(
            dimension_semantics=("parallel",)),
        cost_estimate=pl.CostEstimate(flops=flops, transcendentals=0,
                                      bytes_accessed=bytes_accessed),
    )(x.astype(jnp.float32), w1_tap, s1, w2_tap, s2)
    return out


def branch_reference(x, conv1_w, conv1_b, bn1, conv2_w, conv2_b, bn2, eps=1e-5):
    """Pure-JAX eval-mode reference of Branch.forward (for correctness check)."""
    def conv1d(z, w, b):
        dn = jax.lax.conv_dimension_numbers(z.shape, w.shape, ('NCH', 'OIH', 'NCH'))
        y = jax.lax.conv_general_dilated(z, w, (STRIDE,), 'VALID',
                                         dimension_numbers=dn,
                                         precision=jax.lax.Precision.HIGHEST)
        return y + b[None, :, None]

    def bnorm(z, p):
        gamma, beta, mean, var = p
        return ((z - mean[None, :, None]) / jnp.sqrt(var[None, :, None] + eps)
                * gamma[None, :, None] + beta[None, :, None])

    h = jnp.maximum(bnorm(conv1d(x, conv1_w, conv1_b), bn1), 0.0)
    h = jnp.maximum(bnorm(conv1d(h, conv2_w, conv2_b), bn2), 0.0)
    return h


if __name__ == "__main__":
    B, C_IN, C_OUT, L = 2, 4, 8, 64
    K = KERNEL_SIZE
    key = jax.random.PRNGKey(0)
    ks = jax.random.split(key, 13)

    x = jax.random.normal(ks[0], (B, C_IN, L), dtype=jnp.float32)

    conv1_w = 0.2 * jax.random.normal(ks[1], (C_OUT, C_IN, K), dtype=jnp.float32)
    conv1_b = 0.1 * jax.random.normal(ks[2], (C_OUT,), dtype=jnp.float32)
    bn1 = (1.0 + 0.1 * jax.random.normal(ks[3], (C_OUT,), dtype=jnp.float32),   # gamma
           0.1 * jax.random.normal(ks[4], (C_OUT,), dtype=jnp.float32),          # beta
           0.1 * jax.random.normal(ks[5], (C_OUT,), dtype=jnp.float32),          # running_mean
           jax.random.uniform(ks[6], (C_OUT,), jnp.float32, 0.5, 1.5))           # running_var

    conv2_w = 0.2 * jax.random.normal(ks[7], (2 * C_OUT, C_OUT, K), dtype=jnp.float32)
    conv2_b = 0.1 * jax.random.normal(ks[8], (2 * C_OUT,), dtype=jnp.float32)
    bn2 = (1.0 + 0.1 * jax.random.normal(ks[9], (2 * C_OUT,), dtype=jnp.float32),
           0.1 * jax.random.normal(ks[10], (2 * C_OUT,), dtype=jnp.float32),
           0.1 * jax.random.normal(ks[11], (2 * C_OUT,), dtype=jnp.float32),
           jax.random.uniform(ks[12], (2 * C_OUT,), jnp.float32, 0.5, 1.5))

    out = branch_forward(x, conv1_w, conv1_b, bn1, conv2_w, conv2_b, bn2)
    out = jax.block_until_ready(out)

    l2 = (L - K + 1) - K + 1
    assert out.shape == (B, 2 * C_OUT, l2), out.shape

    ref = branch_reference(x, conv1_w, conv1_b, bn1, conv2_w, conv2_b, bn2)
    np.testing.assert_allclose(np.asarray(out), np.asarray(ref),
                               rtol=2e-3, atol=2e-3)

    print("KERNEL_OK")
</pallas_src>

<mosaic_0001>
module attributes {stable_mosaic.version = 11 : i64} {
  func.func @branch_kernel(%arg0: i32, %arg1: memref<1x4x64xf32, #tpu.memory_space<vmem>>, %arg2: memref<5x8x4xf32, #tpu.memory_space<vmem>>, %arg3: memref<8x1xf32, #tpu.memory_space<vmem>>, %arg4: memref<5x16x8xf32, #tpu.memory_space<vmem>>, %arg5: memref<16x1xf32, #tpu.memory_space<vmem>>, %arg6: memref<1x16x56xf32, #tpu.memory_space<vmem>>) attributes {dimension_semantics = [#tpu.dimension_semantics<parallel>], iteration_bounds = array<i64: 2>, scalar_prefetch = 0 : i64, scratch_operands = 0 : i64, tpu.core_type = #tpu.core_type<tc>, window_params = [{transform_indices = @transform_0, window_bounds = array<i64: 1, 4, 64>}, {pipeline_mode = #tpu.pipeline_mode<synchronous>, transform_indices = @transform_1, window_bounds = array<i64: 5, 8, 4>}, {pipeline_mode = #tpu.pipeline_mode<synchronous>, transform_indices = @transform_2, window_bounds = array<i64: 8, 1>}, {pipeline_mode = #tpu.pipeline_mode<synchronous>, transform_indices = @transform_3, window_bounds = array<i64: 5, 16, 8>}, {pipeline_mode = #tpu.pipeline_mode<synchronous>, transform_indices = @transform_4, window_bounds = array<i64: 16, 1>}, {transform_indices = @transform_5, window_bounds = array<i64: 1, 16, 56>}]} {
    %c0 = arith.constant 0 : index
    %c0_0 = arith.constant 0 : index
    %c0_1 = arith.constant 0 : index
    %0 = vector.load %arg1[%c0, %c0_0, %c0_1] : memref<1x4x64xf32, #tpu.memory_space<vmem>>, vector<1x4x64xf32>
    %1 = vector.shape_cast %0 : vector<1x4x64xf32> to vector<4x64xf32>
    %cst = arith.constant 0.000000e+00 : f32
    %2 = vector.broadcast %cst : f32 to vector<8x60xf32>
    %c0_2 = arith.constant 0 : index
    %c0_3 = arith.constant 0 : index
    %c0_4 = arith.constant 0 : index
    %3 = vector.load %arg2[%c0_2, %c0_3, %c0_4] : memref<5x8x4xf32, #tpu.memory_space<vmem>>, vector<1x8x4xf32>
    %4 = vector.shape_cast %3 : vector<1x8x4xf32> to vector<8x4xf32>
    %5 = vector.extract_strided_slice %1 {offsets = [0, 0], sizes = [4, 60], strides = [1, 1]} : vector<4x64xf32> to vector<4x60xf32>
    %cst_5 = arith.constant dense<0.000000e+00> : vector<8x60xf32>
    %6 = tpu.matmul %4, %5, %cst_5 {dimension_numbers = #tpu.dot_dimension_numbers<[1], [0], [0], [1], [0, 0, 1, 1], [], []>} : vector<8x4xf32>, vector<4x60xf32>, vector<8x60xf32> -> vector<8x60xf32>
    %7 = arith.addf %2, %6 : vector<8x60xf32>
    %c1 = arith.constant 1 : index
    %c0_6 = arith.constant 0 : index
    %c0_7 = arith.constant 0 : index
    %8 = vector.load %arg2[%c1, %c0_6, %c0_7] : memref<5x8x4xf32, #tpu.memory_space<vmem>>, vector<1x8x4xf32>
    %9 = vector.shape_cast %8 : vector<1x8x4xf32> to vector<8x4xf32>
    %10 = vector.extract_strided_slice %1 {offsets = [0, 1], sizes = [4, 60], strides = [1, 1]} : vector<4x64xf32> to vector<4x60xf32>
    %cst_8 = arith.constant dense<0.000000e+00> : vector<8x60xf32>
    %11 = tpu.matmul %9, %10, %cst_8 {dimension_numbers = #tpu.dot_dimension_numbers<[1], [0], [0], [1], [0, 0, 1, 1], [], []>} : vector<8x4xf32>, vector<4x60xf32>, vector<8x60xf32> -> vector<8x60xf32>
    %12 = arith.addf %7, %11 : vector<8x60xf32>
    %c2 = arith.constant 2 : index
    %c0_9 = arith.constant 0 : index
    %c0_10 = arith.constant 0 : index
    %13 = vector.load %arg2[%c2, %c0_9, %c0_10] : memref<5x8x4xf32, #tpu.memory_space<vmem>>, vector<1x8x4xf32>
    %14 = vector.shape_cast %13 : vector<1x8x4xf32> to vector<8x4xf32>
    %15 = vector.extract_strided_slice %1 {offsets = [0, 2], sizes = [4, 60], strides = [1, 1]} : vector<4x64xf32> to vector<4x60xf32>
    %cst_11 = arith.constant dense<0.000000e+00> : vector<8x60xf32>
    %16 = tpu.matmul %14, %15, %cst_11 {dimension_numbers = #tpu.dot_dimension_numbers<[1], [0], [0], [1], [0, 0, 1, 1], [], []>} : vector<8x4xf32>, vector<4x60xf32>, vector<8x60xf32> -> vector<8x60xf32>
    %17 = arith.addf %12, %16 : vector<8x60xf32>
    %c3 = arith.constant 3 : index
    %c0_12 = arith.constant 0 : index
    %c0_13 = arith.constant 0 : index
    %18 = vector.load %arg2[%c3, %c0_12, %c0_13] : memref<5x8x4xf32, #tpu.memory_space<vmem>>, vector<1x8x4xf32>
    %19 = vector.shape_cast %18 : vector<1x8x4xf32> to vector<8x4xf32>
    %20 = vector.extract_strided_slice %1 {offsets = [0, 3], sizes = [4, 60], strides = [1, 1]} : vector<4x64xf32> to vector<4x60xf32>
    %cst_14 = arith.constant dense<0.000000e+00> : vector<8x60xf32>
    %21 = tpu.matmul %19, %20, %cst_14 {dimension_numbers = #tpu.dot_dimension_numbers<[1], [0], [0], [1], [0, 0, 1, 1], [], []>} : vector<8x4xf32>, vector<4x60xf32>, vector<8x60xf32> -> vector<8x60xf32>
    %22 = arith.addf %17, %21 : vector<8x60xf32>
    %c4 = arith.constant 4 : index
    %c0_15 = arith.constant 0 : index
    %c0_16 = arith.constant 0 : index
    %23 = vector.load %arg2[%c4, %c0_15, %c0_16] : memref<5x8x4xf32, #tpu.memory_space<vmem>>, vector<1x8x4xf32>
    %24 = vector.shape_cast %23 : vector<1x8x4xf32> to vector<8x4xf32>
    %25 = vector.extract_strided_slice %1 {offsets = [0, 4], sizes = [4, 60], strides = [1, 1]} : vector<4x64xf32> to vector<4x60xf32>
    %cst_17 = arith.constant dense<0.000000e+00> : vector<8x60xf32>
    %26 = tpu.matmul %24, %25, %cst_17 {dimension_numbers = #tpu.dot_dimension_numbers<[1], [0], [0], [1], [0, 0, 1, 1], [], []>} : vector<8x4xf32>, vector<4x60xf32>, vector<8x60xf32> -> vector<8x60xf32>
    %27 = arith.addf %22, %26 : vector<8x60xf32>
    %c0_18 = arith.constant 0 : index
    %c0_19 = arith.constant 0 : index
    %28 = vector.load %arg3[%c0_18, %c0_19] : memref<8x1xf32, #tpu.memory_space<vmem>>, vector<8x1xf32>
    %29 = vector.broadcast %28 : vector<8x1xf32> to vector<8x60xf32>
    %30 = arith.addf %27, %29 : vector<8x60xf32>
    %cst_20 = arith.constant 0.000000e+00 : f32
    %31 = vector.broadcast %cst_20 : f32 to vector<8x60xf32>
    %32 = arith.maximumf %30, %31 : vector<8x60xf32>
    %cst_21 = arith.constant 0.000000e+00 : f32
    %33 = vector.broadcast %cst_21 : f32 to vector<16x56xf32>
    %c0_22 = arith.constant 0 : index
    %c0_23 = arith.constant 0 : index
    %c0_24 = arith.constant 0 : index
    %34 = vector.load %arg4[%c0_22, %c0_23, %c0_24] : memref<5x16x8xf32, #tpu.memory_space<vmem>>, vector<1x16x8xf32>
    %35 = vector.shape_cast %34 : vector<1x16x8xf32> to vector<16x8xf32>
    %36 = vector.extract_strided_slice %32 {offsets = [0, 0], sizes = [8, 56], strides = [1, 1]} : vector<8x60xf32> to vector<8x56xf32>
    %cst_25 = arith.constant dense<0.000000e+00> : vector<16x56xf32>
    %37 = tpu.matmul %35, %36, %cst_25 {dimension_numbers = #tpu.dot_dimension_numbers<[1], [0], [0], [1], [0, 0, 1, 1], [], []>} : vector<16x8xf32>, vector<8x56xf32>, vector<16x56xf32> -> vector<16x56xf32>
    %38 = arith.addf %33, %37 : vector<16x56xf32>
    %c1_26 = arith.constant 1 : index
    %c0_27 = arith.constant 0 : index
    %c0_28 = arith.constant 0 : index
    %39 = vector.load %arg4[%c1_26, %c0_27, %c0_28] : memref<5x16x8xf32, #tpu.memory_space<vmem>>, vector<1x16x8xf32>
    %40 = vector.shape_cast %39 : vector<1x16x8xf32> to vector<16x8xf32>
    %41 = vector.extract_strided_slice %32 {offsets = [0, 1], sizes = [8, 56], strides = [1, 1]} : vector<8x60xf32> to vector<8x56xf32>
    %cst_29 = arith.constant dense<0.000000e+00> : vector<16x56xf32>
    %42 = tpu.matmul %40, %41, %cst_29 {dimension_numbers = #tpu.dot_dimension_numbers<[1], [0], [0], [1], [0, 0, 1, 1], [], []>} : vector<16x8xf32>, vector<8x56xf32>, vector<16x56xf32> -> vector<16x56xf32>
    %43 = arith.addf %38, %42 : vector<16x56xf32>
    %c2_30 = arith.constant 2 : index
    %c0_31 = arith.constant 0 : index
    %c0_32 = arith.constant 0 : index
    %44 = vector.load %arg4[%c2_30, %c0_31, %c0_32] : memref<5x16x8xf32, #tpu.memory_space<vmem>>, vector<1x16x8xf32>
    %45 = vector.shape_cast %44 : vector<1x16x8xf32> to vector<16x8xf32>
    %46 = vector.extract_strided_slice %32 {offsets = [0, 2], sizes = [8, 56], strides = [1, 1]} : vector<8x60xf32> to vector<8x56xf32>
    %cst_33 = arith.constant dense<0.000000e+00> : vector<16x56xf32>
    %47 = tpu.matmul %45, %46, %cst_33 {dimension_numbers = #tpu.dot_dimension_numbers<[1], [0], [0], [1], [0, 0, 1, 1], [], []>} : vector<16x8xf32>, vector<8x56xf32>, vector<16x56xf32> -> vector<16x56xf32>
    %48 = arith.addf %43, %47 : vector<16x56xf32>
    %c3_34 = arith.constant 3 : index
    %c0_35 = arith.constant 0 : index
    %c0_36 = arith.constant 0 : index
    %49 = vector.load %arg4[%c3_34, %c0_35, %c0_36] : memref<5x16x8xf32, #tpu.memory_space<vmem>>, vector<1x16x8xf32>
    %50 = vector.shape_cast %49 : vector<1x16x8xf32> to vector<16x8xf32>
    %51 = vector.extract_strided_slice %32 {offsets = [0, 3], sizes = [8, 56], strides = [1, 1]} : vector<8x60xf32> to vector<8x56xf32>
    %cst_37 = arith.constant dense<0.000000e+00> : vector<16x56xf32>
    %52 = tpu.matmul %50, %51, %cst_37 {dimension_numbers = #tpu.dot_dimension_numbers<[1], [0], [0], [1], [0, 0, 1, 1], [], []>} : vector<16x8xf32>, vector<8x56xf32>, vector<16x56xf32> -> vector<16x56xf32>
    %53 = arith.addf %48, %52 : vector<16x56xf32>
    %c4_38 = arith.constant 4 : index
    %c0_39 = arith.constant 0 : index
    %c0_40 = arith.constant 0 : index
    %54 = vector.load %arg4[%c4_38, %c0_39, %c0_40] : memref<5x16x8xf32, #tpu.memory_space<vmem>>, vector<1x16x8xf32>
    %55 = vector.shape_cast %54 : vector<1x16x8xf32> to vector<16x8xf32>
    %56 = vector.extract_strided_slice %32 {offsets = [0, 4], sizes = [8, 56], strides = [1, 1]} : vector<8x60xf32> to vector<8x56xf32>
    %cst_41 = arith.constant dense<0.000000e+00> : vector<16x56xf32>
    %57 = tpu.matmul %55, %56, %cst_41 {dimension_numbers = #tpu.dot_dimension_numbers<[1], [0], [0], [1], [0, 0, 1, 1], [], []>} : vector<16x8xf32>, vector<8x56xf32>, vector<16x56xf32> -> vector<16x56xf32>
    %58 = arith.addf %53, %57 : vector<16x56xf32>
    %c0_42 = arith.constant 0 : index
    %c0_43 = arith.constant 0 : index
    %59 = vector.load %arg5[%c0_42, %c0_43] : memref<16x1xf32, #tpu.memory_space<vmem>>, vector<16x1xf32>
    %60 = vector.broadcast %59 : vector<16x1xf32> to vector<16x56xf32>
    %61 = arith.addf %58, %60 : vector<16x56xf32>
    %cst_44 = arith.constant 0.000000e+00 : f32
    %62 = vector.broadcast %cst_44 : f32 to vector<16x56xf32>
    %63 = arith.maximumf %61, %62 : vector<16x56xf32>
    %c0_45 = arith.constant 0 : index
    %c0_46 = arith.constant 0 : index
    %c0_47 = arith.constant 0 : index
    %64 = vector.load %arg6[%c0_45, %c0_46, %c0_47] : memref<1x16x56xf32, #tpu.memory_space<vmem>>, vector<1x16x56xf32>
    %65 = vector.shape_cast %64 : vector<1x16x56xf32> to vector<16x56xf32>
    %66 = vector.shape_cast %63 : vector<16x56xf32> to vector<1x16x56xf32>
    tpu.vector_store %arg6[%c0_45, %c0_46, %c0_47], %66 {strides = array<i32>} : memref<1x16x56xf32, #tpu.memory_space<vmem>>, vector<1x16x56xf32>,
    return
  }
  func.func @transform_0(%arg0: i32) -> (i32, i32, i32) {
    %c0_i32 = arith.constant 0 : i32
    %c0_i32_0 = arith.constant 0 : i32
    %c0_i32_1 = arith.constant 0 : i32
    return %arg0, %c0_i32, %c0_i32_0 : i32, i32, i32
  }
  func.func @transform_1(%arg0: i32) -> (i32, i32, i32) {
    %c0_i32 = arith.constant 0 : i32
    %c0_i32_0 = arith.constant 0 : i32
    %c0_i32_1 = arith.constant 0 : i32
    %c0_i32_2 = arith.constant 0 : i32
    return %c0_i32, %c0_i32_0, %c0_i32_1 : i32, i32, i32
  }
  func.func @transform_2(%arg0: i32) -> (i32, i32) {
    %c0_i32 = arith.constant 0 : i32
    %c0_i32_0 = arith.constant 0 : i32
    %c0_i32_1 = arith.constant 0 : i32
    return %c0_i32, %c0_i32_0 : i32, i32
  }
  func.func @transform_3(%arg0: i32) -> (i32, i32, i32) {
    %c0_i32 = arith.constant 0 : i32
    %c0_i32_0 = arith.constant 0 : i32
    %c0_i32_1 = arith.constant 0 : i32
    %c0_i32_2 = arith.constant 0 : i32
    return %c0_i32, %c0_i32_0, %c0_i32_1 : i32, i32, i32
  }
  func.func @transform_4(%arg0: i32) -> (i32, i32) {
    %c0_i32 = arith.constant 0 : i32
    %c0_i32_0 = arith.constant 0 : i32
    %c0_i32_1 = arith.constant 0 : i32
    return %c0_i32, %c0_i32_0 : i32, i32
  }
  func.func @transform_5(%arg0: i32) -> (i32, i32, i32) {
    %c0_i32 = arith.constant 0 : i32
    %c0_i32_0 = arith.constant 0 : i32
    %c0_i32_1 = arith.constant 0 : i32
    return %arg0, %c0_i32, %c0_i32_0 : i32, i32, i32
  }
}

</mosaic_0001>

<llo_original>
// kernel: tpu_custom_call.1
$region0: #{tpu_custom_call.1}
  #allocation0 [shape = 'u32[]', space=smem, size = 0x4, offset = 0x4, fixed_abs, tag = 'smem constant byte address 0x4 - core index']
  #allocation1 [shape = 'u32[144,128]{1,0:T(1,128)}', space=vmem, size = 0x12000, scoped, tag = 'internal scratch']
  %s0 = inlined_call_operand.vmem [shape: f32[2,4,64], index: 0, kind: input, shape index: {}]
  %s1 = inlined_call_operand.vmem [shape: f32[5,8,4], index: 1, kind: input, shape index: {}]
  %s2 = inlined_call_operand.vmem [shape: f32[8,1], index: 2, kind: input, shape index: {}]
  %s3 = inlined_call_operand.vmem [shape: f32[5,16,8], index: 3, kind: input, shape index: {}]
  %s4 = inlined_call_operand.vmem [shape: f32[16,1], index: 4, kind: input, shape index: {}]
  %s5 = inlined_call_operand.hbm [shape: f32[2,16,56], index: 5, kind: output, shape index: {}]
  %s6 = sld [smem:[#allocation0]]
  $region53: #{tpu_custom_call.1} parent=0
    _
  %s8 = ssub.s32 1, %s6
  %s9 = scalar_select 0, %s8, %s6
  $region1: #{tpu_custom_call.1} parent=0
    #allocation2 [shape = 'u8[16384]{0}', space=vmem, size = 0x4000, scoped, tag = 'output window, operand 0']
    #allocation3 [shape = 's32[2]{0}', space=sflag, size = 0x8, scoped, tag = 'scoped memory for tpu_custom_call.1']
    %10 = vsyncpa [#allocation3], 0
    %s11 = scalar_lea.sflag [#allocation3], 1
    %12 = vsyncpa %s11, 0
    loop: start=0, step=1, limit=4
    $region2: #{tpu_custom_call.1} parent=1 // loop_pre_header
      _
    $region3: #{tpu_custom_call.1} parent=1 // loop_header
      %s14 = sphi 0, %s18
      %p15 = scmp.ge.s32.totalorder %s14, 4
      %s24 = sphi 0, %s26
      %s27 = sphi 0, %s24
      %s28 = sphi 0, %s27
      %s44 = sphi 0, %s28
      %s48 = sphi 0, %s48
      %s50 = sphi 0, %s48
      %s51 = sphi 0, %s50
      %s65 = sphi 0, %s51
      %s69 = sphi 0, %s69
      %s71 = sphi 0, %s69
      %s72 = sphi 0, %s71
      %s86 = sphi 0, %s72
      %s90 = sphi 0, %s90
      %s92 = sphi 0, %s90
      %s93 = sphi 0, %s92
      %s107 = sphi 0, %s93
      %s111 = sphi 0, %s111
      %s113 = sphi 0, %s111
      %s114 = sphi 0, %s113
      %s128 = sphi 0, %s114
      %s134 = sphi 0, %s136
      %s137 = sphi 0, %s134
      %s138 = sphi 0, %s137
      %s154 = sphi 0, %s138
    $region4: #{tpu_custom_call.1} parent=1 // loop_header_branch
      %17 = sbr.rel (%p15) target = $region8
    $region5: #{tpu_custom_call.1} parent=1 // loop_body
      %s19 = ssub.s32 %s14, 1
      %s20 = ssub.s32 %s14, 2
      %s21 = sadd.s32 %s14, 1
      %s22 = ssub.s32 %s14, %s21
      %p23 = scmp.eq.s32.totalorder %s22, 0
      %s25 = sadd.s32 %s24, 1
      %s26 = scalar_select %p23, %s24, %s25
      %p29 = pneg %p23
      %p30 = scmp.eq.s32.totalorder %s14, 1
      %p31 = por %p29, %p30
      %p32 = scmp.ne.s32.totalorder %s24, %s27
      %p33 = scmp.eq.s32.totalorder %s14, 0
      %p34 = por %p32, %p33
      %p35 = scmp.ne.s32.totalorder %s24, %s27
      %p36 = scmp.eq.s32.totalorder %s19, 1
      %p37 = por %p35, %p36
      %p38 = scmp.ne.s32.totalorder %s27, %s28
      %p39 = scmp.eq.s32.totalorder %s19, 0
      %p40 = por %p38, %p39
      %p41 = scmp.ne.s32.totalorder %s27, %s28
      %p42 = scmp.eq.s32.totalorder %s20, 1
      %p43 = por %p41, %p42
      %p45 = scmp.ne.s32.totalorder %s28, %s44
      %p46 = scmp.eq.s32.totalorder %s20, 0
      %p47 = por %p45, %p46
      %s49 = sadd.s32 %s48, 1
      %p52 = scmp.eq.s32.totalorder %s14, 1
      %p53 = scmp.ne.s32.totalorder %s48, %s50
      %p54 = scmp.eq.s32.totalorder %s14, 0
      %p55 = por %p53, %p54
      %p56 = scmp.ne.s32.totalorder %s48, %s50
      %p57 = scmp.eq.s32.totalorder %s19, 1
      %p58 = por %p56, %p57
      %p59 = scmp.ne.s32.totalorder %s50, %s51
      %p60 = scmp.eq.s32.totalorder %s19, 0
      %p61 = por %p59, %p60
      %p62 = scmp.ne.s32.totalorder %s50, %s51
      %p63 = scmp.eq.s32.totalorder %s20, 1
      %p64 = por %p62, %p63
      %p66 = scmp.ne.s32.totalorder %s51, %s65
      %p67 = scmp.eq.s32.totalorder %s20, 0
      %p68 = por %p66, %p67
      %s70 = sadd.s32 %s69, 1
      %p73 = scmp.eq.s32.totalorder %s14, 1
      %p74 = scmp.ne.s32.totalorder %s69, %s71
      %p75 = scmp.eq.s32.totalorder %s14, 0
      %p76 = por %p74, %p75
      %p77 = scmp.ne.s32.totalorder %s69, %s71
      %p78 = scmp.eq.s32.totalorder %s19, 1
      %p79 = por %p77, %p78
      %p80 = scmp.ne.s32.totalorder %s71, %s72
      %p81 = scmp.eq.s32.totalorder %s19, 0
      %p82 = por %p80, %p81
      %p83 = scmp.ne.s32.totalorder %s71, %s72
      %p84 = scmp.eq.s32.totalorder %s20, 1
      %p85 = por %p83, %p84
      %p87 = scmp.ne.s32.totalorder %s72, %s86
      %p88 = scmp.eq.s32.totalorder %s20, 0
      %p89 = por %p87, %p88
      %s91 = sadd.s32 %s90, 1
      %p94 = scmp.eq.s32.totalorder %s14, 1
      %p95 = scmp.ne.s32.totalorder %s90, %s92
      %p96 = scmp.eq.s32.totalorder %s14, 0
      %p97 = por %p95, %p96
      %p98 = scmp.ne.s32.totalorder %s90, %s92
      %p99 = scmp.eq.s32.totalorder %s19, 1
      %p100 = por %p98, %p99
      %p101 = scmp.ne.s32.totalorder %s92, %s93
      %p102 = scmp.eq.s32.totalorder %s19, 0
      %p103 = por %p101, %p102
      %p104 = scmp.ne.s32.totalorder %s92, %s93
      %p105 = scmp.eq.s32.totalorder %s20, 1
      %p106 = por %p104, %p105
      %p108 = scmp.ne.s32.totalorder %s93, %s107
      %p109 = scmp.eq.s32.totalorder %s20, 0
      %p110 = por %p108, %p109
      %s112 = sadd.s32 %s111, 1
      %p115 = scmp.eq.s32.totalorder %s14, 1
      %p116 = scmp.ne.s32.totalorder %s111, %s113
      %p117 = scmp.eq.s32.totalorder %s14, 0
      %p118 = por %p116, %p117
      %p119 = scmp.ne.s32.totalorder %s111, %s113
      %p120 = scmp.eq.s32.totalorder %s19, 1
      %p121 = por %p119, %p120
      %p122 = scmp.ne.s32.totalorder %s113, %s114
      %p123 = scmp.eq.s32.totalorder %s19, 0
      %p124 = por %p122, %p123
      %p125 = scmp.ne.s32.totalorder %s113, %s114
      %p126 = scmp.eq.s32.totalorder %s20, 1
      %p127 = por %p125, %p126
      %p129 = scmp.ne.s32.totalorder %s114, %s128
      %p130 = scmp.eq.s32.totalorder %s20, 0
      %p131 = por %p129, %p130
      %s132 = ssub.s32 %s14, %s21
      %p133 = scmp.eq.s32.totalorder %s132, 0
      %s135 = sadd.s32 %s134, 1
      %s136 = scalar_select %p133, %s134, %s135
      %p139 = pneg %p133
      %p140 = scmp.eq.s32.totalorder %s14, 1
      %p141 = por %p139, %p140
      %p142 = scmp.ne.s32.totalorder %s134, %s137
      %p143 = scmp.eq.s32.totalorder %s14, 0
      %p144 = por %p142, %p143
      %p145 = scmp.ne.s32.totalorder %s134, %s137
      %p146 = scmp.eq.s32.totalorder %s19, 1
      %p147 = por %p145, %p146
      %p148 = scmp.ne.s32.totalorder %s137, %s138
      %p149 = scmp.eq.s32.totalorder %s19, 0
      %p150 = por %p148, %p149
      %p151 = scmp.ne.s32.totalorder %s137, %s138
      %p152 = scmp.eq.s32.totalorder %s20, 1
      %p153 = por %p151, %p152
      %p155 = scmp.ne.s32.totalorder %s138, %s154
      %p156 = scmp.eq.s32.totalorder %s20, 0
      %p157 = por %p155, %p156
      %p158 = scmp.le.s32.totalorder 1, %s14
      %p159 = scmp.lt.s32.totalorder %s14, 3
      %p160 = pnand %p158, %p159
      %p161 = pneg %p160
      // Predicated region
      $region9: #{tpu_custom_call.1} parent=5 // pred_check
        _
      $region10: #{tpu_custom_call.1} parent=5 // pred_check_branch
        %163 = sbr.rel (%p160) target = $region12
      $region11: #{tpu_custom_call.1} parent=5 // pred_region
        %s164 = ssub.s32 %s14, 1
        // Predicated region
        $region13: #{tpu_custom_call.1} parent=11 // pred_check
          %p165 = pneg %p61
        $region14: #{tpu_custom_call.1} parent=11 // pred_check_branch
          %167 = sbr.rel (%p165) target = $region16
        $region15: #{tpu_custom_call.1} parent=11 // pred_region
          _
        $region16: #{tpu_custom_call.1} parent=11 // pred_fallthru
          _
        // Predicated region
        $region17: #{tpu_custom_call.1} parent=11 // pred_check
          %p168 = pneg %p82
        $region18: #{tpu_custom_call.1} parent=11 // pred_check_branch
          %170 = sbr.rel (%p168) target = $region20
        $region19: #{tpu_custom_call.1} parent=11 // pred_region
          _
        $region20: #{tpu_custom_call.1} parent=11 // pred_fallthru
          _
        // Predicated region
        $region21: #{tpu_custom_call.1} parent=11 // pred_check
          %p171 = pneg %p103
        $region22: #{tpu_custom_call.1} parent=11 // pred_check_branch
          %173 = sbr.rel (%p171) target = $region24
        $region23: #{tpu_custom_call.1} parent=11 // pred_region
          _
        $region24: #{tpu_custom_call.1} parent=11 // pred_fallthru
          _
        // Predicated region
        $region25: #{tpu_custom_call.1} parent=11 // pred_check
          %p174 = pneg %p124
        $region26: #{tpu_custom_call.1} parent=11 // pred_check_branch
          %176 = sbr.rel (%p174) target = $region28
        $region27: #{tpu_custom_call.1} parent=11 // pred_region
          _
        $region28: #{tpu_custom_call.1} parent=11 // pred_fallthru
          _
      $region12: #{tpu_custom_call.1} parent=5 // pred_fallthru
        _
      %p177 = scmp.lt.s32.totalorder %s14, 2
      // Predicated region
      $region29: #{tpu_custom_call.1} parent=5 // pred_check
        %p178 = pneg %p177
      $region30: #{tpu_custom_call.1} parent=5 // pred_check_branch
        %180 = sbr.rel (%p178) target = $region32
      $region31: #{tpu_custom_call.1} parent=5 // pred_region
        // Predicated region
        $region33: #{tpu_custom_call.1} parent=31 // pred_check
          %p181 = pneg %p34
        $region34: #{tpu_custom_call.1} parent=31 // pred_check_branch
          %183 = sbr.rel (%p181) target = $region36
        $region35: #{tpu_custom_call.1} parent=31 // pred_region
          %p184 = scmp.lt.s32.totalorder %s14, 1
          %s185 = scalar_select %p184, %s14, 1
          %s186 = smul.addr %s185, 4
          %s187 = scalar_lea.vmem %s0, %s186
        $region36: #{tpu_custom_call.1} parent=31 // pred_fallthru
          _
      $region32: #{tpu_custom_call.1} parent=5 // pred_fallthru
        _
      %p188 = scmp.le.s32.totalorder 1, %s14
      %p189 = scmp.lt.s32.totalorder %s14, 3
      %p190 = pnand %p188, %p189
      %p191 = pneg %p190
      // Predicated region
      $region37: #{tpu_custom_call.1} parent=5 // pred_check
        _
      $region38: #{tpu_custom_call.1} parent=5 // pred_check_branch
        %193 = sbr.rel (%p190) target = $region40
      $region39: #{tpu_custom_call.1} parent=5 // pred_region
        %s194 = ssub.s32 %s14, 1
        %p195 = scmp.lt.s32.totalorder %s19, 1
        %s196 = scalar_select %p195, %s19, 1
        %s197 = smul.addr %s196, 4
        %s198 = scalar_lea.vmem %s0, %s197
        %p199 = pneg %p40
        %p200 = pneg %p37
        %p201 = pneg %p61
        %p202 = pneg %p58
        %p203 = pneg %p82
        %p204 = pneg %p79
        %p205 = pneg %p103
        %p206 = pneg %p100
        %p207 = pneg %p124
        %p208 = pneg %p121
        %p209 = pneg %p150
        %p210 = pneg %p147
        %s211 = sand.u32 %s137, 1
        %s212 = scalar_lea.sflag [#allocation3], %s211
        %s213 = sand.u32 %s137, 1
        %s214 = smul.addr %s213, 16
        %s215 = scalar_lea.vmem [#allocation2], %s214
        %p216 = scmp.lt.s32.totalorder %s19, 1
        %s217 = scalar_select %p216, %s19, 1
        %s218 = smul.addr %s217, 4
        %s219 = scalar_lea.vmem %s0, %s218
        %v220 = vld [vmem:[%s219] sm:$0xf]
        %v221 = vld [vmem:[%s1] sm:$0xff]
        %s222 = scalar_lea.vmem %s1, 8
        %v223 = vld [vmem:[%s222] sm:$0xff]
        %225 = vrot.lane.b32.xlu0 %v220, 127
        %v226 = vpop.permute.xlu0 %225
        %vm227 = vcmask 31744
        %v229 = vsel %vm227, %v223, 0
        %vm231 = vcmask 1043456
        %v232 = vsel %vm231, %v226, 0
        %234 = vmatprep.subr.mxu0 0.0
        %235 = vmatpush1.msra.mxu0 %v232
        %236 = vmatprep.subr.mxu0 0.0
        %237 = vmatpush1.msra.mxu0 0.0
        %238 = vmatprep.subr.mxu0 0.0
        %239 = vmatpush1.msra.mxu0 0.0
        %240 = vmatprep.subr.mxu0 0.0
        %241 = vmatpush1.msra.mxu0 0.0
        %242 = vmatprep.subr.mxu0 0.0
        %243 = vmatpush1.msra.mxu0 0.0
        %244 = vmatprep.subr.mxu0 0.0
        %245 = vmatpush1.msra.mxu0 0.0
        %246 = vmatprep.subr.mxu0 0.0
        %247 = vmatpush1.msra.mxu0 0.0
        %248 = vmatprep.subr.mxu0 0.0
        %249 = vmatpush1.msra.mxu0 0.0
        %250 = vmatprep.subr.mxu0 0.0
        %251 = vmatpush1.msra.mxu0 0.0
        %252 = vmatprep.subr.mxu0 0.0
        %253 = vmatpush1.msra.mxu0 0.0
        %254 = vmatprep.subr.mxu0 0.0
        %255 = vmatpush1.msra.mxu0 0.0
        %256 = vmatprep.subr.mxu0 0.0
        %257 = vmatpush1.msra.mxu0 0.0
        %258 = vmatprep.subr.mxu0 0.0
        %259 = vmatpush1.msra.mxu0 0.0
        %260 = vmatprep.subr.mxu0 0.0
        %261 = vmatpush1.msra.mxu0 0.0
        %262 = vmatprep.subr.mxu0 0.0
        %263 = vmatpush1.msra.mxu0 0.0
        %264 = vmatprep.subr.mxu0 0.0
        %265 = vmatpush1.msra.mxu0 0.0
        %266 = vmatprep.subr.mxu0 0.0
        %267 = vmatpush1.msra.mxu0 0.0
        %268 = vmatprep.subr.mxu0 0.0
        %269 = vmatpush1.msra.mxu0 0.0
        %270 = vmatprep.subr.mxu0 0.0
        %271 = vmatpush1.msra.mxu0 0.0
        %272 = vmatprep.subr.mxu0 0.0
        %273 = vmatpush1.msra.mxu0 0.0
        %274 = vmatprep.subr.mxu0 0.0
        %275 = vmatpush1.msra.mxu0 0.0
        %276 = vmatprep.subr.mxu0 0.0
        %277 = vmatpush1.msra.mxu0 0.0
        %278 = vmatprep.subr.mxu0 0.0
        %279 = vmatpush1.msra.mxu0 0.0
        %280 = vmatprep.subr.mxu0 0.0
        %281 = vmatpush1.msra.mxu0 0.0
        %282 = vmatprep.subr.mxu0 0.0
        %283 = vmatpush1.msra.mxu0 0.0
        %284 = vmatprep.subr.mxu0 0.0
        %285 = vmatpush1.msra.mxu0 0.0
        %286 = vmatprep.subr.mxu0 0.0
        %287 = vmatpush1.msra.mxu0 0.0
        %288 = vmatprep.subr.mxu0 0.0
        %289 = vmatpush1.msra.mxu0 0.0
        %290 = vmatprep.subr.mxu0 0.0
        %291 = vmatpush1.msra.mxu0 0.0
        %292 = vmatprep.subr.mxu0 0.0
        %293 = vmatpush1.msra.mxu0 0.0
        %294 = vmatprep.subr.mxu0 0.0
        %295 = vmatpush1.msra.mxu0 0.0
        %296 = vmatprep.subr.mxu0 0.0
        %297 = vmatpush1.msra.mxu0 0.0
        %298 = vmatprep.mubr.f32.mxu0 0.0
        %299 = vmatmul.mubr.f32.gmra.mrb[0].mxu0 %v229
        %v300 = vpop.f32.mrb[0].mxu0
        %v301 = vadd.f32 0.0, %v300
        %v302 = vpop.f32.mrb[0].mxu0
        %303 = vdwg.mxu0
        %v305 = vsel %vm227, %v221, 0
        %v307 = vsel %vm231, %v220, 0
        %309 = vmatprep.subr.mxu0 0.0
        %310 = vmatpush1.msra.mxu0 %v307
        %311 = vmatprep.subr.mxu0 0.0
        %312 = vmatpush1.msra.mxu0 0.0
        %313 = vmatprep.subr.mxu0 0.0
        %314 = vmatpush1.msra.mxu0 0.0
        %315 = vmatprep.subr.mxu0 0.0
        %316 = vmatpush1.msra.mxu0 0.0
        %317 = vmatprep.subr.mxu0 0.0
        %318 = vmatpush1.msra.mxu0 0.0
        %319 = vmatprep.subr.mxu0 0.0
        %320 = vmatpush1.msra.mxu0 0.0
        %321 = vmatprep.subr.mxu0 0.0
        %322 = vmatpush1.msra.mxu0 0.0
        %323 = vmatprep.subr.mxu0 0.0
        %324 = vmatpush1.msra.mxu0 0.0
        %325 = vmatprep.subr.mxu0 0.0
        %326 = vmatpush1.msra.mxu0 0.0
        %327 = vmatprep.subr.mxu0 0.0
        %328 = vmatpush1.msra.mxu0 0.0
        %329 = vmatprep.subr.mxu0 0.0
        %330 = vmatpush1.msra.mxu0 0.0
        %331 = vmatprep.subr.mxu0 0.0
        %332 = vmatpush1.msra.mxu0 0.0
        %333 = vmatprep.subr.mxu0 0.0
        %334 = vmatpush1.msra.mxu0 0.0
        %335 = vmatprep.subr.mxu0 0.0
        %336 = vmatpush1.msra.mxu0 0.0
        %337 = vmatprep.subr.mxu0 0.0
        %338 = vmatpush1.msra.mxu0 0.0
        %339 = vmatprep.subr.mxu0 0.0
        %340 = vmatpush1.msra.mxu0 0.0
        %341 = vmatprep.subr.mxu0 0.0
        %342 = vmatpush1.msra.mxu0 0.0
        %343 = vmatprep.subr.mxu0 0.0
        %344 = vmatpush1.msra.mxu0 0.0
        %345 = vmatprep.subr.mxu0 0.0
        %346 = vmatpush1.msra.mxu0 0.0
        %347 = vmatprep.subr.mxu0 0.0
        %348 = vmatpush1.msra.mxu0 0.0
        %349 = vmatprep.subr.mxu0 0.0
        %350 = vmatpush1.msra.mxu0 0.0
        %351 = vmatprep.subr.mxu0 0.0
        %352 = vmatpush1.msra.mxu0 0.0
        %353 = vmatprep.subr.mxu0 0.0
        %354 = vmatpush1.msra.mxu0 0.0
        %355 = vmatprep.subr.mxu0 0.0
        %356 = vmatpush1.msra.mxu0 0.0
        %357 = vmatprep.subr.mxu0 0.0
        %358 = vmatpush1.msra.mxu0 0.0
        %359 = vmatprep.subr.mxu0 0.0
        %360 = vmatpush1.msra.mxu0 0.0
        %361 = vmatprep.subr.mxu0 0.0
        %362 = vmatpush1.msra.mxu0 0.0
        %363 = vmatprep.subr.mxu0 0.0
        %364 = vmatpush1.msra.mxu0 0.0
        %365 = vmatprep.subr.mxu0 0.0
        %366 = vmatpush1.msra.mxu0 0.0
        %367 = vmatprep.subr.mxu0 0.0
        %368 = vmatpush1.msra.mxu0 0.0
        %369 = vmatprep.subr.mxu0 0.0
        %370 = vmatpush1.msra.mxu0 0.0
        %371 = vmatprep.subr.mxu0 0.0
        %372 = vmatpush1.msra.mxu0 0.0
        %373 = vmatprep.mubr.f32.mxu0 0.0
        %374 = vmatmul.mubr.f32.gmra.mrb[0].mxu0 %v305
        %v375 = vpop.f32.mrb[0].mxu0
        %v376 = vadd.f32 %v301, %v375
        %v377 = vpop.f32.mrb[0].mxu0
        %378 = vdwg.mxu0
        %s379 = scalar_lea.vmem %s1, 16
        %v380 = vld [vmem:[%s379] sm:$0xff]
        %381 = vrot.lane.b32.xlu0 %v220, 126
        %v382 = vpop.permute.xlu0 %381
        %v384 = vsel %vm227, %v380, 0
        %v386 = vsel %vm231, %v382, 0
        %388 = vmatprep.subr.mxu0 0.0
        %389 = vmatpush1.msra.mxu0 %v386
        %390 = vmatprep.subr.mxu0 0.0
        %391 = vmatpush1.msra.mxu0 0.0
        %392 = vmatprep.subr.mxu0 0.0
        %393 = vmatpush1.msra.mxu0 0.0
        %394 = vmatprep.subr.mxu0 0.0
        %395 = vmatpush1.msra.mxu0 0.0
        %396 = vmatprep.subr.mxu0 0.0
        %397 = vmatpush1.msra.mxu0 0.0
        %398 = vmatprep.subr.mxu0 0.0
        %399 = vmatpush1.msra.mxu0 0.0
        %400 = vmatprep.subr.mxu0 0.0
        %401 = vmatpush1.msra.mxu0 0.0
        %402 = vmatprep.subr.mxu0 0.0
        %403 = vmatpush1.msra.mxu0 0.0
        %404 = vmatprep.subr.mxu0 0.0
        %405 = vmatpush1.msra.mxu0 0.0
        %406 = vmatprep.subr.mxu0 0.0
        %407 = vmatpush1.msra.mxu0 0.0
        %408 = vmatprep.subr.mxu0 0.0
        %409 = vmatpush1.msra.mxu0 0.0
        %410 = vmatprep.subr.mxu0 0.0
        %411 = vmatpush1.msra.mxu0 0.0
        %412 = vmatprep.subr.mxu0 0.0
        %413 = vmatpush1.msra.mxu0 0.0
        %414 = vmatprep.subr.mxu0 0.0
        %415 = vmatpush1.msra.mxu0 0.0
        %416 = vmatprep.subr.mxu0 0.0
        %417 = vmatpush1.msra.mxu0 0.0
        %418 = vmatprep.subr.mxu0 0.0
        %419 = vmatpush1.msra.mxu0 0.0
        %420 = vmatprep.subr.mxu0 0.0
        %421 = vmatpush1.msra.mxu0 0.0
        %422 = vmatprep.subr.mxu0 0.0
        %423 = vmatpush1.msra.mxu0 0.0
        %424 = vmatprep.subr.mxu0 0.0
        %425 = vmatpush1.msra.mxu0 0.0
        %426 = vmatprep.subr.mxu0 0.0
        %427 = vmatpush1.msra.mxu0 0.0
        %428 = vmatprep.subr.mxu0 0.0
        %429 = vmatpush1.msra.mxu0 0.0
        %430 = vmatprep.subr.mxu0 0.0
        %431 = vmatpush1.msra.mxu0 0.0
        %432 = vmatprep.subr.mxu0 0.0
        %433 = vmatpush1.msra.mxu0 0.0
        %434 = vmatprep.subr.mxu0 0.0
        %435 = vmatpush1.msra.mxu0 0.0
        %436 = vmatprep.subr.mxu0 0.0
        %437 = vmatpush1.msra.mxu0 0.0
        %438 = vmatprep.subr.mxu0 0.0
        %439 = vmatpush1.msra.mxu0 0.0
        %440 = vmatprep.subr.mxu0 0.0
        %441 = vmatpush1.msra.mxu0 0.0
        %442 = vmatprep.subr.mxu0 0.0
        %443 = vmatpush1.msra.mxu0 0.0
        %444 = vmatprep.subr.mxu0 0.0
        %445 = vmatpush1.msra.mxu0 0.0
        %446 = vmatprep.subr.mxu0 0.0
        %447 = vmatpush1.msra.mxu0 0.0
        %448 = vmatprep.subr.mxu0 0.0
        %449 = vmatpush1.msra.mxu0 0.0
        %450 = vmatprep.subr.mxu0 0.0
        %451 = vmatpush1.msra.mxu0 0.0
        %452 = vmatprep.mubr.f32.mxu0 0.0
        %453 = vmatmul.mubr.f32.gmra.mrb[0].mxu0 %v384
        %v454 = vpop.f32.mrb[0].mxu0
        %v455 = vadd.f32 0.0, %v454
        %v456 = vpop.f32.mrb[0].mxu0
        %457 = vdwg.mxu0
        %v458 = vadd.f32 %v376, %v455
        %s459 = scalar_lea.vmem %s1, 24
        %v460 = vld [vmem:[%s459] sm:$0xff]
        %461 = vrot.lane.b32.xlu0 %v220, 125
        %v462 = vpop.permute.xlu0 %461
        %v464 = vsel %vm227, %v460, 0
        %v466 = vsel %vm231, %v462, 0
        %468 = vmatprep.subr.mxu0 0.0
        %469 = vmatpush1.msra.mxu0 %v466
        %470 = vmatprep.subr.mxu0 0.0
        %471 = vmatpush1.msra.mxu0 0.0
        %472 = vmatprep.subr.mxu0 0.0
        %473 = vmatpush1.msra.mxu0 0.0
        %474 = vmatprep.subr.mxu0 0.0
        %475 = vmatpush1.msra.mxu0 0.0
        %476 = vmatprep.subr.mxu0 0.0
        %477 = vmatpush1.msra.mxu0 0.0
        %478 = vmatprep.subr.mxu0 0.0
        %479 = vmatpush1.msra.mxu0 0.0
        %480 = vmatprep.subr.mxu0 0.0
        %481 = vmatpush1.msra.mxu0 0.0
        %482 = vmatprep.subr.mxu0 0.0
        %483 = vmatpush1.msra.mxu0 0.0
        %484 = vmatprep.subr.mxu0 0.0
        %485 = vmatpush1.msra.mxu0 0.0
        %486 = vmatprep.subr.mxu0 0.0
        %487 = vmatpush1.msra.mxu0 0.0
        %488 = vmatprep.subr.mxu0 0.0
        %489 = vmatpush1.msra.mxu0 0.0
        %490 = vmatprep.subr.mxu0 0.0
        %491 = vmatpush1.msra.mxu0 0.0
        %492 = vmatprep.subr.mxu0 0.0
        %493 = vmatpush1.msra.mxu0 0.0
        %494 = vmatprep.subr.mxu0 0.0
        %495 = vmatpush1.msra.mxu0 0.0
        %496 = vmatprep.subr.mxu0 0.0
        %497 = vmatpush1.msra.mxu0 0.0
        %498 = vmatprep.subr.mxu0 0.0
        %499 = vmatpush1.msra.mxu0 0.0
        %500 = vmatprep.subr.mxu0 0.0
        %501 = vmatpush1.msra.mxu0 0.0
        %502 = vmatprep.subr.mxu0 0.0
        %503 = vmatpush1.msra.mxu0 0.0
        %504 = vmatprep.subr.mxu0 0.0
        %505 = vmatpush1.msra.mxu0 0.0
        %506 = vmatprep.subr.mxu0 0.0
        %507 = vmatpush1.msra.mxu0 0.0
        %508 = vmatprep.subr.mxu0 0.0
        %509 = vmatpush1.msra.mxu0 0.0
        %510 = vmatprep.subr.mxu0 0.0
        %511 = vmatpush1.msra.mxu0 0.0
        %512 = vmatprep.subr.mxu0 0.0
        %513 = vmatpush1.msra.mxu0 0.0
        %514 = vmatprep.subr.mxu0 0.0
        %515 = vmatpush1.msra.mxu0 0.0
        %516 = vmatprep.subr.mxu0 0.0
        %517 = vmatpush1.msra.mxu0 0.0
        %518 = vmatprep.subr.mxu0 0.0
        %519 = vmatpush1.msra.mxu0 0.0
        %520 = vmatprep.subr.mxu0 0.0
        %521 = vmatpush1.msra.mxu0 0.0
        %522 = vmatprep.subr.mxu0 0.0
        %523 = vmatpush1.msra.mxu0 0.0
        %524 = vmatprep.subr.mxu0 0.0
        %525 = vmatpush1.msra.mxu0 0.0
        %526 = vmatprep.subr.mxu0 0.0
        %527 = vmatpush1.msra.mxu0 0.0
        %528 = vmatprep.subr.mxu0 0.0
        %529 = vmatpush1.msra.mxu0 0.0
        %530 = vmatprep.subr.mxu0 0.0
        %531 = vmatpush1.msra.mxu0 0.0
        %532 = vmatprep.mubr.f32.mxu0 0.0
        %533 = vmatmul.mubr.f32.gmra.mrb[0].mxu0 %v464
        %v534 = vpop.f32.mrb[0].mxu0
        %v535 = vadd.f32 0.0, %v534
        %v536 = vpop.f32.mrb[0].mxu0
        %537 = vdwg.mxu0
        %v538 = vadd.f32 %v458, %v535
        %s539 = scalar_lea.vmem %s1, 32
        %v540 = vld [vmem:[%s539] sm:$0xff]
        %541 = vrot.lane.b32.xlu0 %v220, 124
        %v542 = vpop.permute.xlu0 %541
        %v544 = vsel %vm227, %v540, 0
        %v546 = vsel %vm231, %v542, 0
        %548 = vmatprep.subr.mxu0 0.0
        %549 = vmatpush1.msra.mxu0 %v546
        %550 = vmatprep.subr.mxu0 0.0
        %551 = vmatpush1.msra.mxu0 0.0
        %552 = vmatprep.subr.mxu0 0.0
        %553 = vmatpush1.msra.mxu0 0.0
        %554 = vmatprep.subr.mxu0 0.0
        %555 = vmatpush1.msra.mxu0 0.0
        %556 = vmatprep.subr.mxu0 0.0
        %557 = vmatpush1.msra.mxu0 0.0
        %558 = vmatprep.subr.mxu0 0.0
        %559 = vmatpush1.msra.mxu0 0.0
        %560 = vmatprep.subr.mxu0 0.0
        %561 = vmatpush1.msra.mxu0 0.0
        %562 = vmatprep.subr.mxu0 0.0
        %563 = vmatpush1.msra.mxu0 0.0
        %564 = vmatprep.subr.mxu0 0.0
        %565 = vmatpush1.msra.mxu0 0.0
        %566 = vmatprep.subr.mxu0 0.0
        %567 = vmatpush1.msra.mxu0 0.0
        %568 = vmatprep.subr.mxu0 0.0
        %569 = vmatpush1.msra.mxu0 0.0
        %570 = vmatprep.subr.mxu0 0.0
        %571 = vmatpush1.msra.mxu0 0.0
        %572 = vmatprep.subr.mxu0 0.0
        %573 = vmatpush1.msra.mxu0 0.0
        %574 = vmatprep.subr.mxu0 0.0
        %575 = vmatpush1.msra.mxu0 0.0
        %576 = vmatprep.subr.mxu0 0.0
        %577 = vmatpush1.msra.mxu0 0.0
        %578 = vmatprep.subr.mxu0 0.0
        %579 = vmatpush1.msra.mxu0 0.0
        %580 = vmatprep.subr.mxu0 0.0
        %581 = vmatpush1.msra.mxu0 0.0
        %582 = vmatprep.subr.mxu0 0.0
        %583 = vmatpush1.msra.mxu0 0.0
        %584 = vmatprep.subr.mxu0 0.0
        %585 = vmatpush1.msra.mxu0 0.0
        %586 = vmatprep.subr.mxu0 0.0
        %587 = vmatpush1.msra.mxu0 0.0
        %588 = vmatprep.subr.mxu0 0.0
        %589 = vmatpush1.msra.mxu0 0.0
        %590 = vmatprep.subr.mxu0 0.0
        %591 = vmatpush1.msra.mxu0 0.0
        %592 = vmatprep.subr.mxu0 0.0
        %593 = vmatpush1.msra.mxu0 0.0
        %594 = vmatprep.subr.mxu0 0.0
        %595 = vmatpush1.msra.mxu0 0.0
        %596 = vmatprep.subr.mxu0 0.0
        %597 = vmatpush1.msra.mxu0 0.0
        %598 = vmatprep.subr.mxu0 0.0
        %599 = vmatpush1.msra.mxu0 0.0
        %600 = vmatprep.subr.mxu0 0.0
        %601 = vmatpush1.msra.mxu0 0.0
        %602 = vmatprep.subr.mxu0 0.0
        %603 = vmatpush1.msra.mxu0 0.0
        %604 = vmatprep.subr.mxu0 0.0
        %605 = vmatpush1.msra.mxu0 0.0
        %606 = vmatprep.subr.mxu0 0.0
        %607 = vmatpush1.msra.mxu0 0.0
        %608 = vmatprep.subr.mxu0 0.0
        %609 = vmatpush1.msra.mxu0 0.0
        %610 = vmatprep.subr.mxu0 0.0
        %611 = vmatpush1.msra.mxu0 0.0
        %612 = vmatprep.mubr.f32.mxu0 0.0
        %613 = vmatmul.mubr.f32.gmra.mrb[0].mxu0 %v544
        %v614 = vpop.f32.mrb[0].mxu0
        %v615 = vadd.f32 0.0, %v614
        %v616 = vpop.f32.mrb[0].mxu0
        %617 = vdwg.mxu0
        %v618 = vadd.f32 %v538, %v615
        %v619 = vld [vmem:[%s2] sm:$0xff]
        %621 = vset.pattern.permute.xlu0 0
        %622 = vperm.xlu0 %621, %v619
        %v623 = vpop.permute.xlu0 %622
        %v625 = vadd.f32 %v618, %v623
        %v626 = vmax.f32 %v625, 0.0
        %v627 = vld [vmem:[%s3] sm:$0xff]
        %v628 = vld [vmem:[%s3 + $0x8] sm:$0xff]
        %s629 = scalar_lea.vmem %s3, 16
        %v630 = vld [vmem:[%s629] sm:$0xff]
        %v631 = vld [vmem:[%s629 + $0x8] sm:$0xff]
        %633 = vrot.lane.b32.xlu0 %v626, 127
        %v634 = vpop.permute.xlu0 %633
        %vm636 = vcmask 64512
        %v638 = vsel %vm636, %v630, 0
        %v641 = vsel %vm636, %v631, 0
        %643 = vmatprep.subr.mxu0 0.0
        %644 = vmatpush1.msra.mxu0 %v634
        %645 = vmatprep.subr.mxu0 0.0
        %646 = vmatpush1.msra.mxu0 0.0
        %647 = vmatprep.subr.mxu0 0.0
        %648 = vmatpush1.msra.mxu0 0.0
        %649 = vmatprep.subr.mxu0 0.0
        %650 = vmatpush1.msra.mxu0 0.0
        %651 = vmatprep.subr.mxu0 0.0
        %652 = vmatpush1.msra.mxu0 0.0
        %653 = vmatprep.subr.mxu0 0.0
        %654 = vmatpush1.msra.mxu0 0.0
        %655 = vmatprep.subr.mxu0 0.0
        %656 = vmatpush1.msra.mxu0 0.0
        %657 = vmatprep.subr.mxu0 0.0
        %658 = vmatpush1.msra.mxu0 0.0
        %659 = vmatprep.subr.mxu0 0.0
        %660 = vmatpush1.msra.mxu0 0.0
        %661 = vmatprep.subr.mxu0 0.0
        %662 = vmatpush1.msra.mxu0 0.0
        %663 = vmatprep.subr.mxu0 0.0
        %664 = vmatpush1.msra.mxu0 0.0
        %665 = vmatprep.subr.mxu0 0.0
        %666 = vmatpush1.msra.mxu0 0.0
        %667 = vmatprep.subr.mxu0 0.0
        %668 = vmatpush1.msra.mxu0 0.0
        %669 = vmatprep.subr.mxu0 0.0
        %670 = vmatpush1.msra.mxu0 0.0
        %671 = vmatprep.subr.mxu0 0.0
        %672 = vmatpush1.msra.mxu0 0.0
        %673 = vmatprep.subr.mxu0 0.0
        %674 = vmatpush1.msra.mxu0 0.0
        %675 = vmatprep.subr.mxu0 0.0
        %676 = vmatpush1.msra.mxu0 0.0
        %677 = vmatprep.subr.mxu0 0.0
        %678 = vmatpush1.msra.mxu0 0.0
        %679 = vmatprep.subr.mxu0 0.0
        %680 = vmatpush1.msra.mxu0 0.0
        %681 = vmatprep.subr.mxu0 0.0
        %682 = vmatpush1.msra.mxu0 0.0
        %683 = vmatprep.subr.mxu0 0.0
        %684 = vmatpush1.msra.mxu0 0.0
        %685 = vmatprep.subr.mxu0 0.0
        %686 = vmatpush1.msra.mxu0 0.0
        %687 = vmatprep.subr.mxu0 0.0
        %688 = vmatpush1.msra.mxu0 0.0
        %689 = vmatprep.subr.mxu0 0.0
        %690 = vmatpush1.msra.mxu0 0.0
        %691 = vmatprep.subr.mxu0 0.0
        %692 = vmatpush1.msra.mxu0 0.0
        %693 = vmatprep.subr.mxu0 0.0
        %694 = vmatpush1.msra.mxu0 0.0
        %695 = vmatprep.subr.mxu0 0.0
        %696 = vmatpush1.msra.mxu0 0.0
        %697 = vmatprep.subr.mxu0 0.0
        %698 = vmatpush1.msra.mxu0 0.0
        %699 = vmatprep.subr.mxu0 0.0
        %700 = vmatpush1.msra.mxu0 0.0
        %701 = vmatprep.subr.mxu0 0.0
        %702 = vmatpush1.msra.mxu0 0.0
        %703 = vmatprep.subr.mxu0 0.0
        %704 = vmatpush1.msra.mxu0 0.0
        %705 = vmatprep.subr.mxu0 0.0
        %706 = vmatpush1.msra.mxu0 0.0
        %707 = vmatprep.mubr.f32.mxu0 0.0
        %708 = vmatmul.mubr.f32.gmra.mrb[0].mxu0 %v638
        %v709 = vpop.f32.mrb[0].mxu0
        %v710 = vadd.f32 0.0, %v709
        %v711 = vpop.f32.mrb[0].mxu0
        %712 = vmatprep.mubr.f32.mxu0 0.0
        %713 = vmatmul.mubr.f32.gmra.mrb[0].mxu0 %v641
        %v714 = vpop.f32.mrb[0].mxu0
        %v715 = vadd.f32 0.0, %v714
        %v716 = vpop.f32.mrb[0].mxu0
        %717 = vdwg.mxu0
        %v719 = vsel %vm636, %v627, 0
        %v722 = vsel %vm636, %v628, 0
        %724 = vmatprep.subr.mxu0 0.0
        %725 = vmatpush1.msra.mxu0 %v626
        %726 = vmatprep.subr.mxu0 0.0
        %727 = vmatpush1.msra.mxu0 0.0
        %728 = vmatprep.subr.mxu0 0.0
        %729 = vmatpush1.msra.mxu0 0.0
        %730 = vmatprep.subr.mxu0 0.0
        %731 = vmatpush1.msra.mxu0 0.0
        %732 = vmatprep.subr.mxu0 0.0
        %733 = vmatpush1.msra.mxu0 0.0
        %734 = vmatprep.subr.mxu0 0.0
        %735 = vmatpush1.msra.mxu0 0.0
        %736 = vmatprep.subr.mxu0 0.0
        %737 = vmatpush1.msra.mxu0 0.0
        %738 = vmatprep.subr.mxu0 0.0
        %739 = vmatpush1.msra.mxu0 0.0
        %740 = vmatprep.subr.mxu0 0.0
        %741 = vmatpush1.msra.mxu0 0.0
        %742 = vmatprep.subr.mxu0 0.0
        %743 = vmatpush1.msra.mxu0 0.0
        %744 = vmatprep.subr.mxu0 0.0
        %745 = vmatpush1.msra.mxu0 0.0
        %746 = vmatprep.subr.mxu0 0.0
        %747 = vmatpush1.msra.mxu0 0.0
        %748 = vmatprep.subr.mxu0 0.0
        %749 = vmatpush1.msra.mxu0 0.0
        %750 = vmatprep.subr.mxu0 0.0
        %751 = vmatpush1.msra.mxu0 0.0
        %752 = vmatprep.subr.mxu0 0.0
        %753 = vmatpush1.msra.mxu0 0.0
        %754 = vmatprep.subr.mxu0 0.0
        %755 = vmatpush1.msra.mxu0 0.0
        %756 = vmatprep.subr.mxu0 0.0
        %757 = vmatpush1.msra.mxu0 0.0
        %758 = vmatprep.subr.mxu0 0.0
        %759 = vmatpush1.msra.mxu0 0.0
        %760 = vmatprep.subr.mxu0 0.0
        %761 = vmatpush1.msra.mxu0 0.0
        %762 = vmatprep.subr.mxu0 0.0
        %763 = vmatpush1.msra.mxu0 0.0
        %764 = vmatprep.subr.mxu0 0.0
        %765 = vmatpush1.msra.mxu0 0.0
        %766 = vmatprep.subr.mxu0 0.0
        %767 = vmatpush1.msra.mxu0 0.0
        %768 = vmatprep.subr.mxu0 0.0
        %769 = vmatpush1.msra.mxu0 0.0
        %770 = vmatprep.subr.mxu0 0.0
        %771 = vmatpush1.msra.mxu0 0.0
        %772 = vmatprep.subr.mxu0 0.0
        %773 = vmatpush1.msra.mxu0 0.0
        %774 = vmatprep.subr.mxu0 0.0
        %775 = vmatpush1.msra.mxu0 0.0
        %776 = vmatprep.subr.mxu0 0.0
        %777 = vmatpush1.msra.mxu0 0.0
        %778 = vmatprep.subr.mxu0 0.0
        %779 = vmatpush1.msra.mxu0 0.0
        %780 = vmatprep.subr.mxu0 0.0
        %781 = vmatpush1.msra.mxu0 0.0
        %782 = vmatprep.subr.mxu0 0.0
        %783 = vmatpush1.msra.mxu0 0.0
        %784 = vmatprep.subr.mxu0 0.0
        %785 = vmatpush1.msra.mxu0 0.0
        %786 = vmatprep.subr.mxu0 0.0
        %787 = vmatpush1.msra.mxu0 0.0
        %788 = vmatprep.mubr.f32.mxu0 0.0
        %789 = vmatmul.mubr.f32.gmra.mrb[0].mxu0 %v719
        %v790 = vpop.f32.mrb[0].mxu0
        %v791 = vadd.f32 %v710, %v790
        %v792 = vpop.f32.mrb[0].mxu0
        %793 = vmatprep.mubr.f32.mxu0 0.0
        %794 = vmatmul.mubr.f32.gmra.mrb[0].mxu0 %v722
        %v795 = vpop.f32.mrb[0].mxu0
        %v796 = vadd.f32 %v715, %v795
        %v797 = vpop.f32.mrb[0].mxu0
        %798 = vdwg.mxu0
        %s799 = scalar_lea.vmem %s3, 32
        %v800 = vld [vmem:[%s799] sm:$0xff]
        %v801 = vld [vmem:[%s799 + $0x8] sm:$0xff]
        %802 = vrot.lane.b32.xlu0 %v626, 126
        %v803 = vpop.permute.xlu0 %802
        %v806 = vsel %vm636, %v800, 0
        %v809 = vsel %vm636, %v801, 0
        %811 = vmatprep.subr.mxu0 0.0
        %812 = vmatpush1.msra.mxu0 %v803
        %813 = vmatprep.subr.mxu0 0.0
        %814 = vmatpush1.msra.mxu0 0.0
        %815 = vmatprep.subr.mxu0 0.0
        %816 = vmatpush1.msra.mxu0 0.0
        %817 = vmatprep.subr.mxu0 0.0
        %818 = vmatpush1.msra.mxu0 0.0
        %819 = vmatprep.subr.mxu0 0.0
        %820 = vmatpush1.msra.mxu0 0.0
        %821 = vmatprep.subr.mxu0 0.0
        %822 = vmatpush1.msra.mxu0 0.0
        %823 = vmatprep.subr.mxu0 0.0
        %824 = vmatpush1.msra.mxu0 0.0
        %825 = vmatprep.subr.mxu0 0.0
        %826 = vmatpush1.msra.mxu0 0.0
        %827 = vmatprep.subr.mxu0 0.0
        %828 = vmatpush1.msra.mxu0 0.0
        %829 = vmatprep.subr.mxu0 0.0
        %830 = vmatpush1.msra.mxu0 0.0
        %831 = vmatprep.subr.mxu0 0.0
        %832 = vmatpush1.msra.mxu0 0.0
        %833 = vmatprep.subr.mxu0 0.0
        %834 = vmatpush1.msra.mxu0 0.0
        %835 = vmatprep.subr.mxu0 0.0
        %836 = vmatpush1.msra.mxu0 0.0
        %837 = vmatprep.subr.mxu0 0.0
        %838 = vmatpush1.msra.mxu0 0.0
        %839 = vmatprep.subr.mxu0 0.0
        %840 = vmatpush1.msra.mxu0 0.0
        %841 = vmatprep.subr.mxu0 0.0
        %842 = vmatpush1.msra.mxu0 0.0
        %843 = vmatprep.subr.mxu0 0.0
        %844 = vmatpush1.msra.mxu0 0.0
        %845 = vmatprep.subr.mxu0 0.0
        %846 = vmatpush1.msra.mxu0 0.0
        %847 = vmatprep.subr.mxu0 0.0
        %848 = vmatpush1.msra.mxu0 0.0
        %849 = vmatprep.subr.mxu0 0.0
        %850 = vmatpush1.msra.mxu0 0.0
        %851 = vmatprep.subr.mxu0 0.0
        %852 = vmatpush1.msra.mxu0 0.0
        %853 = vmatprep.subr.mxu0 0.0
        %854 = vmatpush1.msra.mxu0 0.0
        %855 = vmatprep.subr.mxu0 0.0
        %856 = vmatpush1.msra.mxu0 0.0
        %857 = vmatprep.subr.mxu0 0.0
        %858 = vmatpush1.msra.mxu0 0.0
        %859 = vmatprep.subr.mxu0 0.0
        %860 = vmatpush1.msra.mxu0 0.0
        %861 = vmatprep.subr.mxu0 0.0
        %862 = vmatpush1.msra.mxu0 0.0
        %863 = vmatprep.subr.mxu0 0.0
        %864 = vmatpush1.msra.mxu0 0.0
        %865 = vmatprep.subr.mxu0 0.0
        %866 = vmatpush1.msra.mxu0 0.0
        %867 = vmatprep.subr.mxu0 0.0
        %868 = vmatpush1.msra.mxu0 0.0
        %869 = vmatprep.subr.mxu0 0.0
        %870 = vmatpush1.msra.mxu0 0.0
        %871 = vmatprep.subr.mxu0 0.0
        %872 = vmatpush1.msra.mxu0 0.0
        %873 = vmatprep.subr.mxu0 0.0
        %874 = vmatpush1.msra.mxu0 0.0
        %875 = vmatprep.mubr.f32.mxu0 0.0
        %876 = vmatmul.mubr.f32.gmra.mrb[0].mxu0 %v806
        %v877 = vpop.f32.mrb[0].mxu0
        %v878 = vadd.f32 0.0, %v877
        %v879 = vpop.f32.mrb[0].mxu0
        %880 = vmatprep.mubr.f32.mxu0 0.0
        %881 = vmatmul.mubr.f32.gmra.mrb[0].mxu0 %v809
        %v882 = vpop.f32.mrb[0].mxu0
        %v883 = vadd.f32 0.0, %v882
        %v884 = vpop.f32.mrb[0].mxu0
        %885 = vdwg.mxu0
        %v886 = vadd.f32 %v791, %v878
        %v887 = vadd.f32 %v796, %v883
        %s888 = scalar_lea.vmem %s3, 48
        %v889 = vld [vmem:[%s888] sm:$0xff]
        %v890 = vld [vmem:[%s888 + $0x8] sm:$0xff]
        %891 = vrot.lane.b32.xlu0 %v626, 125
        %v892 = vpop.permute.xlu0 %891
        %v895 = vsel %vm636, %v889, 0
        %v898 = vsel %vm636, %v890, 0
        %900 = vmatprep.subr.mxu0 0.0
        %901 = vmatpush1.msra.mxu0 %v892
        %902 = vmatprep.subr.mxu0 0.0
        %903 = vmatpush1.msra.mxu0 0.0
        %904 = vmatprep.subr.mxu0 0.0
        %905 = vmatpush1.msra.mxu0 0.0
        %906 = vmatprep.subr.mxu0 0.0
        %907 = vmatpush1.msra.mxu0 0.0
        %908 = vmatprep.subr.mxu0 0.0
        %909 = vmatpush1.msra.mxu0 0.0
        %910 = vmatprep.subr.mxu0 0.0
        %911 = vmatpush1.msra.mxu0 0.0
        %912 = vmatprep.subr.mxu0 0.0
        %913 = vmatpush1.msra.mxu0 0.0
        %914 = vmatprep.subr.mxu0 0.0
        %915 = vmatpush1.msra.mxu0 0.0
        %916 = vmatprep.subr.mxu0 0.0
        %917 = vmatpush1.msra.mxu0 0.0
        %918 = vmatprep.subr.mxu0 0.0
        %919 = vmatpush1.msra.mxu0 0.0
        %920 = vmatprep.subr.mxu0 0.0
        %921 = vmatpush1.msra.mxu0 0.0
        %922 = vmatprep.subr.mxu0 0.0
        %923 = vmatpush1.msra.mxu0 0.0
        %924 = vmatprep.subr.mxu0 0.0
        %925 = vmatpush1.msra.mxu0 0.0
        %926 = vmatprep.subr.mxu0 0.0
        %927 = vmatpush1.msra.mxu0 0.0
        %928 = vmatprep.subr.mxu0 0.0
        %929 = vmatpush1.msra.mxu0 0.0
        %930 = vmatprep.subr.mxu0 0.0
        %931 = vmatpush1.msra.mxu0 0.0
        %932 = vmatprep.subr.mxu0 0.0
        %933 = vmatpush1.msra.mxu0 0.0
        %934 = vmatprep.subr.mxu0 0.0
        %935 = vmatpush1.msra.mxu0 0.0
        %936 = vmatprep.subr.mxu0 0.0
        %937 = vmatpush1.msra.mxu0 0.0
        %938 = vmatprep.subr.mxu0 0.0
        %939 = vmatpush1.msra.mxu0 0.0
        %940 = vmatprep.subr.mxu0 0.0
        %941 = vmatpush1.msra.mxu0 0.0
        %942 = vmatprep.subr.mxu0 0.0
        %943 = vmatpush1.msra.mxu0 0.0
        %944 = vmatprep.subr.mxu0 0.0
        %945 = vmatpush1.msra.mxu0 0.0
        %946 = vmatprep.subr.mxu0 0.0
        %947 = vmatpush1.msra.mxu0 0.0
        %948 = vmatprep.subr.mxu0 0.0
        %949 = vmatpush1.msra.mxu0 0.0
        %950 = vmatprep.subr.mxu0 0.0
        %951 = vmatpush1.msra.mxu0 0.0
        %952 = vmatprep.subr.mxu0 0.0
        %953 = vmatpush1.msra.mxu0 0.0
        %954 = vmatprep.subr.mxu0 0.0
        %955 = vmatpush1.msra.mxu0 0.0
        %956 = vmatprep.subr.mxu0 0.0
        %957 = vmatpush1.msra.mxu0 0.0
        %958 = vmatprep.subr.mxu0 0.0
        %959 = vmatpush1.msra.mxu0 0.0
        %960 = vmatprep.subr.mxu0 0.0
        %961 = vmatpush1.msra.mxu0 0.0
        %962 = vmatprep.subr.mxu0 0.0
        %963 = vmatpush1.msra.mxu0 0.0
        %964 = vmatprep.mubr.f32.mxu0 0.0
        %965 = vmatmul.mubr.f32.gmra.mrb[0].mxu0 %v895
        %v966 = vpop.f32.mrb[0].mxu0
        %v967 = vadd.f32 0.0, %v966
        %v968 = vpop.f32.mrb[0].mxu0
        %969 = vmatprep.mubr.f32.mxu0 0.0
        %970 = vmatmul.mubr.f32.gmra.mrb[0].mxu0 %v898
        %v971 = vpop.f32.mrb[0].mxu0
        %v972 = vadd.f32 0.0, %v971
        %v973 = vpop.f32.mrb[0].mxu0
        %974 = vdwg.mxu0
        %v975 = vadd.f32 %v886, %v967
        %v976 = vadd.f32 %v887, %v972
        %s977 = scalar_lea.vmem %s3, 64
        %v978 = vld [vmem:[%s977] sm:$0xff]
        %v979 = vld [vmem:[%s977 + $0x8] sm:$0xff]
        %980 = vrot.lane.b32.xlu0 %v626, 124
        %v981 = vpop.permute.xlu0 %980
        %v984 = vsel %vm636, %v978, 0
        %v987 = vsel %vm636, %v979, 0
        %989 = vmatprep.subr.mxu0 0.0
        %990 = vmatpush1.msra.mxu0 %v981
        %991 = vmatprep.subr.mxu0 0.0
        %992 = vmatpush1.msra.mxu0 0.0
        %993 = vmatprep.subr.mxu0 0.0
        %994 = vmatpush1.msra.mxu0 0.0
        %995 = vmatprep.subr.mxu0 0.0
        %996 = vmatpush1.msra.mxu0 0.0
        %997 = vmatprep.subr.mxu0 0.0
        %998 = vmatpush1.msra.mxu0 0.0
        %999 = vmatprep.subr.mxu0 0.0
        %1000 = vmatpush1.msra.mxu0 0.0
        %1001 = vmatprep.subr.mxu0 0.0
        %1002 = vmatpush1.msra.mxu0 0.0
        %1003 = vmatprep.subr.mxu0 0.0
        %1004 = vmatpush1.msra.mxu0 0.0
        %1005 = vmatprep.subr.mxu0 0.0
        %1006 = vmatpush1.msra.mxu0 0.0
        %1007 = vmatprep.subr.mxu0 0.0
        %1008 = vmatpush1.msra.mxu0 0.0
        %1009 = vmatprep.subr.mxu0 0.0
        %1010 = vmatpush1.msra.mxu0 0.0
        %1011 = vmatprep.subr.mxu0 0.0
        %1012 = vmatpush1.msra.mxu0 0.0
        %1013 = vmatprep.subr.mxu0 0.0
        %1014 = vmatpush1.msra.mxu0 0.0
        %1015 = vmatprep.subr.mxu0 0.0
        %1016 = vmatpush1.msra.mxu0 0.0
        %1017 = vmatprep.subr.mxu0 0.0
        %1018 = vmatpush1.msra.mxu0 0.0
        %1019 = vmatprep.subr.mxu0 0.0
        %1020 = vmatpush1.msra.mxu0 0.0
        %1021 = vmatprep.subr.mxu0 0.0
        %1022 = vmatpush1.msra.mxu0 0.0
        %1023 = vmatprep.subr.mxu0 0.0
        %1024 = vmatpush1.msra.mxu0 0.0
        %1025 = vmatprep.subr.mxu0 0.0
        %1026 = vmatpush1.msra.mxu0 0.0
        %1027 = vmatprep.subr.mxu0 0.0
        %1028 = vmatpush1.msra.mxu0 0.0
        %1029 = vmatprep.subr.mxu0 0.0
        %1030 = vmatpush1.msra.mxu0 0.0
        %1031 = vmatprep.subr.mxu0 0.0
        %1032 = vmatpush1.msra.mxu0 0.0
        %1033 = vmatprep.subr.mxu0 0.0
        %1034 = vmatpush1.msra.mxu0 0.0
        %1035 = vmatprep.subr.mxu0 0.0
        %1036 = vmatpush1.msra.mxu0 0.0
        %1037 = vmatprep.subr.mxu0 0.0
        %1038 = vmatpush1.msra.mxu0 0.0
        %1039 = vmatprep.subr.mxu0 0.0
        %1040 = vmatpush1.msra.mxu0 0.0
        %1041 = vmatprep.subr.mxu0 0.0
        %1042 = vmatpush1.msra.mxu0 0.0
        %1043 = vmatprep.subr.mxu0 0.0
        %1044 = vmatpush1.msra.mxu0 0.0
        %1045 = vmatprep.subr.mxu0 0.0
        %1046 = vmatpush1.msra.mxu0 0.0
        %1047 = vmatprep.subr.mxu0 0.0
        %1048 = vmatpush1.msra.mxu0 0.0
        %1049 = vmatprep.subr.mxu0 0.0
        %1050 = vmatpush1.msra.mxu0 0.0
        %1051 = vmatprep.subr.mxu0 0.0
        %1052 = vmatpush1.msra.mxu0 0.0
        %1053 = vmatprep.mubr.f32.mxu0 0.0
        %1054 = vmatmul.mubr.f32.gmra.mrb[0].mxu0 %v984
        %v1055 = vpop.f32.mrb[0].mxu0
        %v1056 = vadd.f32 0.0, %v1055
        %v1057 = vpop.f32.mrb[0].mxu0
        %1058 = vmatprep.mubr.f32.mxu0 0.0
        %1059 = vmatmul.mubr.f32.gmra.mrb[0].mxu0 %v987
        %v1060 = vpop.f32.mrb[0].mxu0
        %v1061 = vadd.f32 0.0, %v1060
        %v1062 = vpop.f32.mrb[0].mxu0
        %1063 = vdwg.mxu0
        %v1064 = vadd.f32 %v975, %v1056
        %v1065 = vadd.f32 %v976, %v1061
        %v1066 = vld [vmem:[%s4] sm:$0xff]
        %v1067 = vld [vmem:[%s4 + $0x8] sm:$0xff]
        %1069 = vset.pattern.permute.xlu0 0
        %1070 = vperm.xlu0 %1069, %v1066
        %v1071 = vpop.permute.xlu0 %1070
        %1074 = vset.pattern.permute.xlu0 0
        %1075 = vperm.xlu0 %1074, %v1067
        %v1076 = vpop.permute.xlu0 %1075
        %v1078 = vadd.f32 %v1064, %v1071
        %v1079 = vadd.f32 %v1065, %v1076
        %v1080 = vmax.f32 %v1078, 0.0
        %v1081 = vmax.f32 %v1079, 0.0
        %vm1082 = vcmask 457728
        %1083 = vst.msk [vmem:[%s215] sm:$0xff] %vm1082, %v1080
        %1084 = vst.msk [vmem:[%s215 + $0x8] sm:$0xff] %vm1082, %v1081
        %s1085 = sand.u32 %s137, 1
        %s1086 = scalar_lea.sflag [#allocation3], %s1085
        %s1087 = sand.u32 %s137, 1
        %s1088 = smul.addr %s1087, 16
        %s1089 = scalar_lea.vmem [#allocation2], %s1088
        // Predicated region
        $region41: #{tpu_custom_call.1} parent=39 // pred_check
          %p1090 = pneg %p147
        $region42: #{tpu_custom_call.1} parent=39 // pred_check_branch
          %1092 = sbr.rel (%p1090) target = $region44
        $region43: #{tpu_custom_call.1} parent=39 // pred_region
          %s1094 = ssub.s32 256, 256
          %1095 = vsyncadd %s1086, %s1094
          %s1096 = smul.addr %s19, 2
          %s1097 = smul.addr %s1096, 128
          %s1098 = scalar_lea.hbm %s5, %s1097
          %s1099 = sshll.u32 %s1089, 4
          %s1100 = int_to_ptr.vmem [resolvable:$true] %s1099
          %1105 = dma.vmem_to_hbm [thread:$0]  %s1100, 256, %s1098, %s1086, 128, 128, 8
        $region44: #{tpu_custom_call.1} parent=39 // pred_fallthru
          _
      $region40: #{tpu_custom_call.1} parent=5 // pred_fallthru
        _
      %p1106 = scmp.le.s32.totalorder 2, %s14
      // Predicated region
      $region45: #{tpu_custom_call.1} parent=5 // pred_check
        %p1107 = pneg %p1106
      $region46: #{tpu_custom_call.1} parent=5 // pred_check_branch
        %1109 = sbr.rel (%p1107) target = $region48
      $region47: #{tpu_custom_call.1} parent=5 // pred_region
        %s1110 = ssub.s32 %s14, 2
        // Predicated region
        $region49: #{tpu_custom_call.1} parent=47 // pred_check
          %p1111 = pneg %p153
        $region50: #{tpu_custom_call.1} parent=47 // pred_check_branch
          %1113 = sbr.rel (%p1111) target = $region52
        $region51: #{tpu_custom_call.1} parent=47 // pred_region
          %s1114 = sand.u32 %s138, 1
          %s1115 = scalar_lea.sflag [#allocation3], %s1114
          %s1116 = sand.u32 %s138, 1
          %s1117 = smul.addr %s1116, 16
          %s1118 = scalar_lea.vmem [#allocation2], %s1117
          %1119 = dma.done %s1115, 256
        $region52: #{tpu_custom_call.1} parent=47 // pred_fallthru
          _
      $region48: #{tpu_custom_call.1} parent=5 // pred_fallthru
        _
    $region6: #{tpu_custom_call.1} parent=1 // loop_footer
      %s18 = sadd.s32 1, %s14
    $region7: #{tpu_custom_call.1} parent=1 // loop_footer_branch
      %13 = sbr.rel target = $region3
    $region8: #{tpu_custom_call.1} parent=1 // loop_exit
      _
    %1120 = vsyncpa [#allocation3], 1
    %s1121 = scalar_lea.sflag [#allocation3], 1
    %1122 = vsyncpa %s1121, 1

</llo_original>
